<compile_context>
chip_gen: v7x
topology: tpu7x:2x2x1
jax: 0.10.0
libtpu: 0.0.40
codegen_flags: <defaults>
</compile_context>

<pallas_src>
import math

import numpy as np
import jax
import jax.numpy as jnp
from jax.experimental import pallas as pl
from jax.experimental.pallas import tpu as pltpu


# ----------------------------- activations ---------------------------------

def _relu(v):
    return jnp.maximum(v, 0.0)


def _gelu(v):
    # exact (erf) gelu, matching torch.nn.functional.gelu default
    return jax.nn.gelu(v, approximate=False)


def _get_act(activation):
    if activation == "relu":
        return _relu
    elif activation == "gelu":
        return _gelu
    raise ValueError(f"Don't know how to handle --activation {activation}")


# ------------------------------ helpers -------------------------------------

_LANE = 128
_MAX_ROW_BLOCK = 1024  # raised from 512: per-step overhead amortizes better


def _round_up(a, b):
    return (a + b - 1) // b * b


def _pad2d(a, rows, cols, dtype=None):
    a = jnp.pad(a, ((0, rows - a.shape[0]), (0, cols - a.shape[1])))
    return a.astype(dtype) if dtype is not None else a


_VMEM_CAP = None


def _vmem_capacity_bytes():
    """Physical VMEM per core (128 MiB v5e/v6e, 64 MiB v7x). Conservative
    64 MiB fallback if the query is unavailable."""
    global _VMEM_CAP
    if _VMEM_CAP is None:
        cap = None
        try:
            info = pltpu.get_tpu_info()
            cap = getattr(info, "vmem_capacity_bytes", None)
        except Exception:
            cap = None
        if not cap:
            cap = 64 * 1024 * 1024
        _VMEM_CAP = int(cap)
    return _VMEM_CAP


def _vmem_plan():
    """(vmem_limit_bytes for the compiler, planning budget with headroom)."""
    cap = _vmem_capacity_bytes()
    limit = max(32 << 20, min(cap * 7 // 8, 112 << 20))   # 112 MiB v5e/v6e, 56 MiB v7x
    budget = limit * 6 // 7                                # 96 MiB / 48 MiB
    return limit, budget


def _choose_row_block(n_rows, row_bytes, fixed_bytes, budget):
    """Largest multiple-of-8 row tile (<=_MAX_ROW_BLOCK) such that
    rb*row_bytes + fixed_bytes fits the VMEM planning budget."""
    rb = min(_MAX_ROW_BLOCK, _round_up(max(int(n_rows), 1), 8))
    while rb > 8 and rb * row_bytes + fixed_bytes > budget:
        rb = max(8, (rb // 2) // 8 * 8)
    return rb


# ------------------------------ kernels -------------------------------------

def _make_kernel(mode, act_fn, dim_p, hid_p):
    """Fused forward kernel for one of the module configs.

    All matmul inputs are bf16 (f32 accumulation); gating / bias / activation
    math is f32. Concats are replaced by split-weight partial products, and
    matmuls sharing the same LHS are N-fused (results sliced lane-aligned).
    """
    f32 = jnp.float32
    bf16 = jnp.bfloat16

    def dot(a, b):
        return jnp.dot(a, b, preferred_element_type=f32)

    if mode == "base":
        # x already has last dim = 2*dim (padded)
        def kernel(x_ref, w1_ref, b1_ref, w2_ref, b2_ref, o_ref):
            h = act_fn(dot(x_ref[...], w1_ref[...]) + b1_ref[...])
            o_ref[...] = dot(h.astype(bf16), w2_ref[...]) + b2_ref[...]
        return kernel

    if mode == "ci":
        # y streamed row-for-row with x.
        # r = sigmoid(x@Wr_x + y@Wr_y + br); out = lin2(act(x@W1_x + (r*y)@W1_y + b1))
        def kernel(x_ref, y_ref, wx_ref, wry_ref, br_ref, w1y_ref,
                   b1_ref, w2_ref, b2_ref, o_ref):
            x = x_ref[...]
            y = y_ref[...]
            px = dot(x, wx_ref[...])                     # x @ [Wr_x | W1_x]
            r = jax.nn.sigmoid(px[:, :dim_p] + dot(y, wry_ref[...]) + br_ref[...])
            gy = (r * y.astype(f32)).astype(bf16)
            h = act_fn(px[:, dim_p:] + dot(gy, w1y_ref[...]) + b1_ref[...])
            o_ref[...] = dot(h.astype(bf16), w2_ref[...]) + b2_ref[...]
        return kernel

    if mode == "ci_kv":
        # Knowledge-vector y ([B,1,dim]): ypre = y@Wr_y + br precomputed (f32),
        # W1_y pre-scaled by y per batch so (r*y)@W1_y == r @ (y*W1_y).
        def kernel(x_ref, ypre_ref, w1ys_ref, wx_ref,
                   b1_ref, w2_ref, b2_ref, o_ref):
            x = x_ref[...]
            px = dot(x, wx_ref[...])                     # x @ [Wr_x | W1_x]
            r = jax.nn.sigmoid(px[:, :dim_p] + ypre_ref[...])
            h = act_fn(px[:, dim_p:] + dot(r.astype(bf16), w1ys_ref[...])
                       + b1_ref[...])
            o_ref[...] = dot(h.astype(bf16), w2_ref[...]) + b2_ref[...]
        return kernel

    if mode == "oi":
        # c = sigmoid(x@Wc_x + y@Wc_y + bc); k = sigmoid(x@Wk_x + z@Wk_z + bk)
        # out = lin2(act(x@W1_x + (c*y)@W1_y + (k*z)@W1_z + b1))
        def kernel(x_ref, y_ref, z_ref, wx_ref, wcy_ref, bc_ref,
                   wkz_ref, bk_ref, w1y_ref, w1z_ref,
                   b1_ref, w2_ref, b2_ref, o_ref):
            x = x_ref[...]
            y = y_ref[...]
            z = z_ref[...]
            px = dot(x, wx_ref[...])                     # x @ [Wc_x | Wk_x | W1_x]
            c = jax.nn.sigmoid(px[:, :dim_p] + dot(y, wcy_ref[...]) + bc_ref[...])
            k = jax.nn.sigmoid(px[:, dim_p:2 * dim_p] + dot(z, wkz_ref[...])
                               + bk_ref[...])
            gy = (c * y.astype(f32)).astype(bf16)
            gz = (k * z.astype(f32)).astype(bf16)
            h = act_fn(px[:, 2 * dim_p:] + dot(gy, w1y_ref[...])
                       + dot(gz, w1z_ref[...]) + b1_ref[...])
            o_ref[...] = dot(h.astype(bf16), w2_ref[...]) + b2_ref[...]
        return kernel

    raise ValueError(mode)


# ------------------------------ wrapper --------------------------------------

def trans_integration_forward(params, x, y=None, z=None, activation="relu"):
    """Pallas-fused forward matching TransIntegration.forward semantics."""
    dim = int(params["dim"])
    hid = int(params["dim_hidden"])
    act_fn = _get_act(activation)
    bf16 = jnp.bfloat16
    f32 = jnp.float32

    dim_p = _round_up(dim, _LANE)
    hid_p = _round_up(hid, _LANE)

    if z is not None:
        mode = "oi"
        assert y is not None
        if y.shape != x.shape:
            y = jnp.broadcast_to(y, x.shape)
        if z.shape != x.shape:
            z = jnp.broadcast_to(z, x.shape)
    elif y is not None:
        mode = "ci"
    else:
        mode = "base"

    lead = x.shape[:-1]
    feat_x = x.shape[-1]
    feat_x_p = _round_up(feat_x, _LANE)

    # ci knowledge-vector case ([B,1,dim] y vs [B,S,dim] x): keep batch as its
    # own grid axis and precompute the y-dependent terms per batch instead of
    # broadcasting y in HBM or re-running identical-row matmuls in the kernel.
    if mode == "ci":
        if (x.ndim == 3 and y.ndim == 3 and y.shape[0] == x.shape[0]
                and y.shape[1] == 1 and y.shape[-1] == feat_x):
            mode = "ci_kv"
        elif y.shape != x.shape:
            y = jnp.broadcast_to(y, x.shape)   # general fallback

    if mode == "ci_kv":
        n_batch, n_rows = int(x.shape[0]), int(x.shape[1])
    else:
        n_batch = 1
        n_rows = int(np.prod(lead)) if lead else 1

    # ---- weights: split concat-matmuls into partial products, N-fuse same-LHS
    #      matmuls, pad to lane multiples, cast matmul operands to bf16.
    w2p = _pad2d(params["w2"], hid_p, dim_p, bf16)
    b2p = _pad2d(params["b2"], 1, dim_p, f32)
    b1p = _pad2d(params["b1"], 1, hid_p, f32)

    per_batch_inputs = []   # (array, block_shape) streamed once per batch (ci_kv)
    if mode == "base":
        wlist = [_pad2d(params["w1"], feat_x_p, hid_p, bf16), b1p, w2p, b2p]
    elif mode in ("ci", "ci_kv"):
        wr, w1 = params["wr"], params["w1"]
        wx = jnp.concatenate(                              # x @ [Wr_x | W1_x]
            [_pad2d(wr[:dim], dim_p, dim_p, bf16),
             _pad2d(w1[:dim], dim_p, hid_p, bf16)], axis=1)
        if mode == "ci_kv":
            # exact-f32 gate term: y @ Wr_y + br  ->  (B, 1, dim_p)
            ypre = jnp.einsum("bkd,dh->bkh", y.astype(f32),
                              wr[dim:].astype(f32)) + params["br"]
            ypre = jnp.pad(ypre, ((0, 0), (0, 0), (0, dim_p - dim))).astype(f32)
            # per-batch y-scaled W1_y:  (r*y)@W1_y == r @ (y[:,None]*W1_y)
            w1ys = y[:, 0, :, None].astype(f32) * w1[dim:].astype(f32)
            w1ys = jnp.pad(w1ys, ((0, 0), (0, dim_p - dim),
                                  (0, hid_p - hid))).astype(bf16)
            per_batch_inputs = [(ypre, (None, 1, dim_p)),
                                (w1ys, (None, dim_p, hid_p))]
            wlist = [wx, b1p, w2p, b2p]
        else:
            wlist = [wx,
                     _pad2d(wr[dim:], dim_p, dim_p, bf16),     # Wr_y
                     _pad2d(params["br"], 1, dim_p, f32),
                     _pad2d(w1[dim:], dim_p, hid_p, bf16),     # W1_y
                     b1p, w2p, b2p]
    else:  # oi
        wc, wk, w1 = params["wc"], params["wk"], params["w1"]
        wx = jnp.concatenate(                      # x @ [Wc_x | Wk_x | W1_x]
            [_pad2d(wc[:dim], dim_p, dim_p, bf16),
             _pad2d(wk[:dim], dim_p, dim_p, bf16),
             _pad2d(w1[:dim], dim_p, hid_p, bf16)], axis=1)
        wlist = [wx,
                 _pad2d(wc[dim:], dim_p, dim_p, bf16),         # Wc_y
                 _pad2d(params["bc"], 1, dim_p, f32),
                 _pad2d(wk[dim:], dim_p, dim_p, bf16),         # Wk_z
                 _pad2d(params["bk"], 1, dim_p, f32),
                 _pad2d(w1[dim:2 * dim], dim_p, hid_p, bf16),  # W1_y
                 _pad2d(w1[2 * dim:], dim_p, hid_p, bf16),     # W1_z
                 b1p, w2p, b2p]

    # ---- VMEM planning (generation-aware) -----------------------------------
    vmem_limit, vmem_budget = _vmem_plan()

    # Resident weights are single-buffered; ci_kv per-batch inputs use default
    # double-buffering (their block index changes with the batch axis).
    fixed_bytes = sum(int(np.prod(w.shape)) * w.dtype.itemsize for w in wlist)
    fixed_bytes += sum(2 * int(np.prod(a.shape[1:])) * a.dtype.itemsize
                       for a, _ in per_batch_inputs)

    nbuf = 2                                              # streamed-row buffers
    row_bytes = nbuf * (feat_x_p * 2 + dim_p * 4)         # x (bf16) + out (f32)
    if mode == "ci":
        row_bytes += nbuf * dim_p * 2                     # y (bf16)
    if mode == "oi":
        row_bytes += 2 * nbuf * dim_p * 2                 # y, z (bf16)
    # live in-kernel intermediates (fused pre-activations, gates, gy/gz, h)
    if mode == "base":
        row_bytes += hid_p * 6 + dim_p * 4
    elif mode == "ci":
        row_bytes += (dim_p + hid_p) * 4 + dim_p * 10 + hid_p * 6
    elif mode == "ci_kv":
        row_bytes += (dim_p + hid_p) * 4 + dim_p * 6 + hid_p * 6
    else:  # oi
        row_bytes += (2 * dim_p + hid_p) * 4 + 2 * dim_p * 10 + hid_p * 6

    rb = _choose_row_block(n_rows, row_bytes, fixed_bytes, vmem_budget)
    rows_p = _round_up(max(n_rows, 1), rb)

    # ---- streamed inputs -----------------------------------------------------
    def prep(a, feat_p):
        a = a.reshape(n_batch, n_rows, a.shape[-1]).astype(bf16)  # cast, then pad
        return jnp.pad(a, ((0, 0), (0, rows_p - n_rows),
                           (0, feat_p - a.shape[-1])))

    row_inputs = [prep(x, feat_x_p)]
    row_specs = [pl.BlockSpec((None, rb, feat_x_p), lambda b, i: (b, i, 0))]

    if mode == "ci":
        row_inputs.append(prep(y, dim_p))
        row_specs.append(pl.BlockSpec((None, rb, dim_p), lambda b, i: (b, i, 0)))
    elif mode == "oi":
        for t in (y, z):
            row_inputs.append(prep(t, dim_p))
            row_specs.append(pl.BlockSpec((None, rb, dim_p),
                                          lambda b, i: (b, i, 0)))
    elif mode == "ci_kv":
        for arr, bshape in per_batch_inputs:
            row_inputs.append(arr)
            row_specs.append(pl.BlockSpec(bshape, lambda b, i: (b, 0, 0)))

    # weights/biases: full VMEM blocks, constant block index -> single-buffered
    w_specs = [pl.BlockSpec(w.shape, lambda b, i: (0, 0),
                            pipeline_mode=pl.Buffered(1)) for w in wlist]

    kernel = _make_kernel(mode, act_fn, dim_p, hid_p)

    out3 = pl.pallas_call(
        kernel,
        out_shape=jax.ShapeDtypeStruct((n_batch, rows_p, dim_p), f32),
        grid_spec=pltpu.PrefetchScalarGridSpec(
            num_scalar_prefetch=0,
            grid=(n_batch, rows_p // rb),
            in_specs=row_specs + w_specs,
            out_specs=pl.BlockSpec((None, rb, dim_p), lambda b, i: (b, i, 0)),
        ),
        compiler_params=pltpu.CompilerParams(
            dimension_semantics=("parallel", "parallel"),
            vmem_limit_bytes=vmem_limit,
        ),
    )(*row_inputs, *wlist)

    out = out3[:, :n_rows, :dim]
    return out.reshape(lead + (dim,))


# --------------------------- parameter init ----------------------------------

def _xavier_uniform(key, fan_in, fan_out):
    bound = math.sqrt(6.0 / (fan_in + fan_out))
    return jax.random.uniform(key, (fan_in, fan_out), jnp.float32, -bound, bound)


def _bias(key, fan_in, fan_out):
    # PyTorch nn.Linear default bias init: U(-1/sqrt(fan_in), 1/sqrt(fan_in))
    bound = 1.0 / math.sqrt(fan_in)
    return jax.random.uniform(key, (1, fan_out), jnp.float32, -bound, bound)


def init_params(key, dim, dim_hidden, ci_ffn=False, oi_ffn=False):
    keys = jax.random.split(key, 10)
    p = {"dim": dim, "dim_hidden": dim_hidden}
    if ci_ffn:
        p["w1"] = _xavier_uniform(keys[0], 2 * dim, dim_hidden)
        p["b1"] = _bias(keys[1], 2 * dim, dim_hidden)
        p["wr"] = _xavier_uniform(keys[2], 2 * dim, dim)
        p["br"] = _bias(keys[3], 2 * dim, dim)
    elif oi_ffn:
        p["w1"] = _xavier_uniform(keys[0], 3 * dim, dim_hidden)
        p["b1"] = _bias(keys[1], 3 * dim, dim_hidden)
        p["wc"] = _xavier_uniform(keys[2], 2 * dim, dim)
        p["bc"] = _bias(keys[3], 2 * dim, dim)
        p["wk"] = _xavier_uniform(keys[4], 2 * dim, dim)
        p["bk"] = _bias(keys[5], 2 * dim, dim)
    else:
        p["w1"] = _xavier_uniform(keys[0], 2 * dim, dim_hidden)
        p["b1"] = _bias(keys[1], 2 * dim, dim_hidden)
    p["w2"] = _xavier_uniform(keys[6], dim_hidden, dim)
    p["b2"] = _bias(keys[7], dim_hidden, dim)
    return p


# ---------------------------- pure-JAX reference ------------------------------

def reference_forward(params, x, y=None, z=None, activation="relu"):
    act = _get_act(activation)

    def lin(a, w, b):
        return a @ w + b

    if y is not None and z is None:
        y = jnp.broadcast_to(y, x.shape)
        r = jax.nn.sigmoid(lin(jnp.concatenate([x, y], -1),
                               params["wr"], params["br"]))
        x = jnp.concatenate([x, r * y], -1)
    if z is not None:
        c = jax.nn.sigmoid(lin(jnp.concatenate([x, y], -1),
                               params["wc"], params["bc"]))
        k = jax.nn.sigmoid(lin(jnp.concatenate([x, z], -1),
                               params["wk"], params["bk"]))
        x = jnp.concatenate([x, c * y, k * z], -1)
    h = act(lin(x, params["w1"], params["b1"]))
    return lin(h, params["w2"], params["b2"])


# --------------------------------- main --------------------------------------

if __name__ == "__main__":
    key = jax.random.PRNGKey(0)
    k_ci, k_oi, k_base, kx, ky1, ky2, kz, kxb = jax.random.split(key, 8)

    B, S, DIM, HID = 2, 8, 32, 64

    x = jax.random.normal(kx, (B, S, DIM), jnp.float32)
    y_ci = jax.random.normal(ky1, (B, 1, DIM), jnp.float32)   # exercises expand()
    y_full = jax.random.normal(ky2, (B, S, DIM), jnp.float32)
    z = jax.random.normal(kz, (B, S, DIM), jnp.float32)
    x_base = jax.random.normal(kxb, (B, S, 2 * DIM), jnp.float32)

    # ci_ffn config: forward(x, y) with [B,1,dim] knowledge vector (ci_kv path)
    p_ci = init_params(k_ci, DIM, HID, ci_ffn=True)
    out_ci = jax.block_until_ready(trans_integration_forward(p_ci, x, y=y_ci))
    ref_ci = reference_forward(p_ci, x, y=y_ci)

    # ci_ffn config: forward(x, y) with full-shaped y (streamed ci path)
    out_cif = jax.block_until_ready(trans_integration_forward(p_ci, x, y=y_full))
    ref_cif = reference_forward(p_ci, x, y=y_full)

    # oi_ffn config: forward(x, y, z)
    p_oi = init_params(k_oi, DIM, HID, oi_ffn=True)
    out_oi = jax.block_until_ready(
        trans_integration_forward(p_oi, x, y=y_full, z=z))
    ref_oi = reference_forward(p_oi, x, y=y_full, z=z)

    # base config: forward(x) with x already 2*dim wide
    p_base = init_params(k_base, DIM, HID)
    out_base = jax.block_until_ready(trans_integration_forward(p_base, x_base))
    ref_base = reference_forward(p_base, x_base)

    assert out_ci.shape == (B, S, DIM)
    assert out_cif.shape == (B, S, DIM)
    assert out_oi.shape == (B, S, DIM)
    assert out_base.shape == (B, S, DIM)
    # bf16 MXU inputs with f32 accumulation -> loosened tolerances vs f32 ref
    np.testing.assert_allclose(np.asarray(out_ci), np.asarray(ref_ci),
                               rtol=2e-2, atol=2e-2)
    np.testing.assert_allclose(np.asarray(out_cif), np.asarray(ref_cif),
                               rtol=2e-2, atol=2e-2)
    np.testing.assert_allclose(np.asarray(out_oi), np.asarray(ref_oi),
                               rtol=2e-2, atol=2e-2)
    np.testing.assert_allclose(np.asarray(out_base), np.asarray(ref_base),
                               rtol=2e-2, atol=2e-2)

    print("KERNEL_OK")
</pallas_src>

<mosaic_0001>
module attributes {stable_mosaic.version = 11 : i64} {
  func.func @kernel(%arg0: i32, %arg1: i32, %arg2: memref<1x8x128xbf16, #tpu.memory_space<vmem>>, %arg3: memref<1x1x128xf32, #tpu.memory_space<vmem>>, %arg4: memref<1x128x128xbf16, #tpu.memory_space<vmem>>, %arg5: memref<128x256xbf16, #tpu.memory_space<vmem>>, %arg6: memref<1x128xf32, #tpu.memory_space<vmem>>, %arg7: memref<128x128xbf16, #tpu.memory_space<vmem>>, %arg8: memref<1x128xf32, #tpu.memory_space<vmem>>, %arg9: memref<1x8x128xf32, #tpu.memory_space<vmem>>) attributes {dimension_semantics = [#tpu.dimension_semantics<parallel>, #tpu.dimension_semantics<parallel>], iteration_bounds = array<i64: 2, 1>, scalar_prefetch = 0 : i64, scratch_operands = 0 : i64, tpu.core_type = #tpu.core_type<tc>, window_params = [{transform_indices = @transform_0, window_bounds = array<i64: 1, 8, 128>}, {transform_indices = @transform_1, window_bounds = array<i64: 1, 1, 128>}, {transform_indices = @transform_2, window_bounds = array<i64: 1, 128, 128>}, {pipeline_mode = #tpu.pipeline_mode<synchronous>, transform_indices = @transform_3, window_bounds = array<i64: 128, 256>}, {pipeline_mode = #tpu.pipeline_mode<synchronous>, transform_indices = @transform_4, window_bounds = array<i64: 1, 128>}, {pipeline_mode = #tpu.pipeline_mode<synchronous>, transform_indices = @transform_5, window_bounds = array<i64: 128, 128>}, {pipeline_mode = #tpu.pipeline_mode<synchronous>, transform_indices = @transform_6, window_bounds = array<i64: 1, 128>}, {transform_indices = @transform_7, window_bounds = array<i64: 1, 8, 128>}]} {
    %c0 = arith.constant 0 : index
    %c0_0 = arith.constant 0 : index
    %c0_1 = arith.constant 0 : index
    %0 = vector.load %arg2[%c0, %c0_0, %c0_1] : memref<1x8x128xbf16, #tpu.memory_space<vmem>>, vector<1x8x128xbf16>
    %1 = vector.shape_cast %0 : vector<1x8x128xbf16> to vector<8x128xbf16>
    %c0_2 = arith.constant 0 : index
    %c0_3 = arith.constant 0 : index
    %2 = vector.load %arg5[%c0_2, %c0_3] : memref<128x256xbf16, #tpu.memory_space<vmem>>, vector<128x256xbf16>
    %cst = arith.constant dense<0.000000e+00> : vector<8x256xf32>
    %3 = tpu.matmul %1, %2, %cst {dimension_numbers = #tpu.dot_dimension_numbers<[1], [0], [0], [1], [0, 0, 1, 1], [], []>} : vector<8x128xbf16>, vector<128x256xbf16>, vector<8x256xf32> -> vector<8x256xf32>
    %4 = vector.extract_strided_slice %3 {offsets = [0, 0], sizes = [8, 128], strides = [1, 1]} : vector<8x256xf32> to vector<8x128xf32>
    %c0_4 = arith.constant 0 : index
    %c0_5 = arith.constant 0 : index
    %c0_6 = arith.constant 0 : index
    %5 = vector.load %arg3[%c0_4, %c0_5, %c0_6] : memref<1x1x128xf32, #tpu.memory_space<vmem>>, vector<1x1x128xf32>
    %6 = vector.shape_cast %5 : vector<1x1x128xf32> to vector<1x128xf32>
    %7 = vector.broadcast %6 : vector<1x128xf32> to vector<8x128xf32>
    %8 = arith.addf %4, %7 : vector<8x128xf32>
    %9 = arith.negf %8 : vector<8x128xf32>
    %10 = math.exp %9 : vector<8x128xf32>
    %cst_7 = arith.constant 1.000000e+00 : f32
    %11 = vector.broadcast %cst_7 : f32 to vector<8x128xf32>
    %12 = arith.addf %11, %10 : vector<8x128xf32>
    %13 = arith.divf %11, %12 : vector<8x128xf32>
    %14 = vector.extract_strided_slice %3 {offsets = [0, 128], sizes = [8, 128], strides = [1, 1]} : vector<8x256xf32> to vector<8x128xf32>
    %15 = arith.truncf %13 : vector<8x128xf32> to vector<8x128xbf16>
    %c0_8 = arith.constant 0 : index
    %c0_9 = arith.constant 0 : index
    %c0_10 = arith.constant 0 : index
    %16 = vector.load %arg4[%c0_8, %c0_9, %c0_10] : memref<1x128x128xbf16, #tpu.memory_space<vmem>>, vector<1x128x128xbf16>
    %17 = vector.shape_cast %16 : vector<1x128x128xbf16> to vector<128x128xbf16>
    %cst_11 = arith.constant dense<0.000000e+00> : vector<8x128xf32>
    %18 = tpu.matmul %15, %17, %cst_11 {dimension_numbers = #tpu.dot_dimension_numbers<[1], [0], [0], [1], [0, 0, 1, 1], [], []>} : vector<8x128xbf16>, vector<128x128xbf16>, vector<8x128xf32> -> vector<8x128xf32>
    %19 = arith.addf %14, %18 : vector<8x128xf32>
    %c0_12 = arith.constant 0 : index
    %c0_13 = arith.constant 0 : index
    %20 = vector.load %arg6[%c0_12, %c0_13] : memref<1x128xf32, #tpu.memory_space<vmem>>, vector<1x128xf32>
    %21 = vector.broadcast %20 : vector<1x128xf32> to vector<8x128xf32>
    %22 = arith.addf %19, %21 : vector<8x128xf32>
    %cst_14 = arith.constant 0.000000e+00 : f32
    %23 = vector.broadcast %cst_14 : f32 to vector<8x128xf32>
    %24 = arith.maximumf %22, %23 : vector<8x128xf32>
    %25 = arith.truncf %24 : vector<8x128xf32> to vector<8x128xbf16>
    %c0_15 = arith.constant 0 : index
    %c0_16 = arith.constant 0 : index
    %26 = vector.load %arg7[%c0_15, %c0_16] : memref<128x128xbf16, #tpu.memory_space<vmem>>, vector<128x128xbf16>
    %cst_17 = arith.constant dense<0.000000e+00> : vector<8x128xf32>
    %27 = tpu.matmul %25, %26, %cst_17 {dimension_numbers = #tpu.dot_dimension_numbers<[1], [0], [0], [1], [0, 0, 1, 1], [], []>} : vector<8x128xbf16>, vector<128x128xbf16>, vector<8x128xf32> -> vector<8x128xf32>
    %c0_18 = arith.constant 0 : index
    %c0_19 = arith.constant 0 : index
    %28 = vector.load %arg8[%c0_18, %c0_19] : memref<1x128xf32, #tpu.memory_space<vmem>>, vector<1x128xf32>
    %29 = vector.broadcast %28 : vector<1x128xf32> to vector<8x128xf32>
    %30 = arith.addf %27, %29 : vector<8x128xf32>
    %c0_20 = arith.constant 0 : index
    %c0_21 = arith.constant 0 : index
    %c0_22 = arith.constant 0 : index
    %31 = vector.load %arg9[%c0_20, %c0_21, %c0_22] : memref<1x8x128xf32, #tpu.memory_space<vmem>>, vector<1x8x128xf32>
    %32 = vector.shape_cast %31 : vector<1x8x128xf32> to vector<8x128xf32>
    %33 = vector.shape_cast %30 : vector<8x128xf32> to vector<1x8x128xf32>
    tpu.vector_store %arg9[%c0_20, %c0_21, %c0_22], %33 {strides = array<i32>} : memref<1x8x128xf32, #tpu.memory_space<vmem>>, vector<1x8x128xf32>,
    return
  }
  func.func @transform_0(%arg0: i32, %arg1: i32) -> (i32, i32, i32) {
    %c0_i32 = arith.constant 0 : i32
    %c0_i32_0 = arith.constant 0 : i32
    return %arg0, %arg1, %c0_i32 : i32, i32, i32
  }
  func.func @transform_1(%arg0: i32, %arg1: i32) -> (i32, i32, i32) {
    %c0_i32 = arith.constant 0 : i32
    %c0_i32_0 = arith.constant 0 : i32
    %c0_i32_1 = arith.constant 0 : i32
    return %arg0, %c0_i32, %c0_i32_0 : i32, i32, i32
  }
  func.func @transform_2(%arg0: i32, %arg1: i32) -> (i32, i32, i32) {
    %c0_i32 = arith.constant 0 : i32
    %c0_i32_0 = arith.constant 0 : i32
    %c0_i32_1 = arith.constant 0 : i32
    return %arg0, %c0_i32, %c0_i32_0 : i32, i32, i32
  }
  func.func @transform_3(%arg0: i32, %arg1: i32) -> (i32, i32) {
    %c0_i32 = arith.constant 0 : i32
    %c0_i32_0 = arith.constant 0 : i32
    %c0_i32_1 = arith.constant 0 : i32
    return %c0_i32, %c0_i32_0 : i32, i32
  }
  func.func @transform_4(%arg0: i32, %arg1: i32) -> (i32, i32) {
    %c0_i32 = arith.constant 0 : i32
    %c0_i32_0 = arith.constant 0 : i32
    %c0_i32_1 = arith.constant 0 : i32
    return %c0_i32, %c0_i32_0 : i32, i32
  }
  func.func @transform_5(%arg0: i32, %arg1: i32) -> (i32, i32) {
    %c0_i32 = arith.constant 0 : i32
    %c0_i32_0 = arith.constant 0 : i32
    %c0_i32_1 = arith.constant 0 : i32
    return %c0_i32, %c0_i32_0 : i32, i32
  }
  func.func @transform_6(%arg0: i32, %arg1: i32) -> (i32, i32) {
    %c0_i32 = arith.constant 0 : i32
    %c0_i32_0 = arith.constant 0 : i32
    %c0_i32_1 = arith.constant 0 : i32
    return %c0_i32, %c0_i32_0 : i32, i32
  }
  func.func @transform_7(%arg0: i32, %arg1: i32) -> (i32, i32, i32) {
    %c0_i32 = arith.constant 0 : i32
    %c0_i32_0 = arith.constant 0 : i32
    return %arg0, %arg1, %c0_i32 : i32, i32, i32
  }
}

</mosaic_0001>

<llo_original>
// kernel: tpu_custom_call.1
$region0: #{tpu_custom_call.1}
  #allocation0 [shape = 'u32[]', space=smem, size = 0x4, offset = 0x4, fixed_abs, tag = 'smem constant byte address 0x4 - core index']
  #allocation1 [shape = 'u32[144,128]{1,0:T(1,128)}', space=vmem, size = 0x12000, scoped, tag = 'internal scratch']
  %s0 = inlined_call_operand.hbm [shape: bf16[2,8,128], index: 0, kind: input, shape index: {}]
  %s1 = inlined_call_operand.vmem [shape: f32[2,1,128], index: 1, kind: input, shape index: {}]
  %s2 = inlined_call_operand.hbm [shape: bf16[2,128,128], index: 2, kind: input, shape index: {}]
  %s3 = inlined_call_operand.hbm [shape: bf16[128,256], index: 3, kind: input, shape index: {}]
  %s4 = inlined_call_operand.vmem [shape: f32[1,128], index: 4, kind: input, shape index: {}]
  %s5 = inlined_call_operand.hbm [shape: bf16[128,128], index: 5, kind: input, shape index: {}]
  %s6 = inlined_call_operand.vmem [shape: f32[1,128], index: 6, kind: input, shape index: {}]
  %s7 = inlined_call_operand.hbm [shape: f32[2,8,128], index: 7, kind: output, shape index: {}]
  %s8 = sld [smem:[#allocation0]]
  $region77: #{tpu_custom_call.1} parent=0
    _
  %s10 = ssub.s32 1, %s8
  %s11 = scalar_select 0, %s10, %s8
  $region1: #{tpu_custom_call.1} parent=0
    #allocation2 [shape = 'u8[4096]{0}', space=vmem, size = 0x1000, scoped, tag = 'input window, operand 0']
    #allocation3 [shape = 's32[2]{0}', space=sflag, size = 0x8, scoped, tag = 'scoped memory for tpu_custom_call.1']
    #allocation4 [shape = 's32[2]{0}', space=sflag, size = 0x8, scoped, tag = 'scoped memory for tpu_custom_call.1']
    #allocation5 [shape = 'u8[65536]{0}', space=vmem, size = 0x10000, scoped, tag = 'input window, operand 2']
    #allocation6 [shape = 's32[2]{0}', space=sflag, size = 0x8, scoped, tag = 'scoped memory for tpu_custom_call.1']
    #allocation7 [shape = 'u8[65536]{0}', space=vmem, size = 0x10000, scoped, tag = 'input window, operand 3, single buffered']
    #allocation8 [shape = 'u8[32768]{0}', space=vmem, size = 0x8000, scoped, tag = 'input window, operand 5, single buffered']
    #allocation9 [shape = 's32[1]{0}', space=sflag, size = 0x4, scoped, tag = 'scoped memory for tpu_custom_call.1']
    #allocation10 [shape = 'u8[8192]{0}', space=vmem, size = 0x2000, scoped, tag = 'output window, operand 0']
    %12 = vsyncpa [#allocation3], 0
    %s13 = scalar_lea.sflag [#allocation3], 1
    %14 = vsyncpa %s13, 0
    %15 = vsyncpa [#allocation6], 0
    %s16 = scalar_lea.sflag [#allocation6], 1
    %17 = vsyncpa %s16, 0
    %18 = vsyncpa [#allocation9], 0
    %19 = vsyncpa [#allocation4], 0
    %s20 = scalar_lea.sflag [#allocation4], 1
    %21 = vsyncpa %s20, 0
    loop: start=0, step=1, limit=4
    $region2: #{tpu_custom_call.1} parent=1 // loop_pre_header
      _
    $region3: #{tpu_custom_call.1} parent=1 // loop_header
      %s23 = sphi 0, %s27
      %p24 = scmp.ge.s32.totalorder %s23, 4
      %s30 = sphi 0, %s42
      %s31 = sphi 0, %s38
      %s32 = sphi 0, %s30
      %s33 = sphi 0, %s31
      %s34 = sphi 0, %s32
      %s35 = sphi 0, %s33
      %s47 = sphi 0, %s49
      %s50 = sphi 0, %s47
      %s51 = sphi 0, %s50
      %s67 = sphi 0, %s51
      %s73 = sphi 0, %s75
      %s76 = sphi 0, %s73
      %s77 = sphi 0, %s76
      %s93 = sphi 0, %s77
      %s99 = sphi 0, %s101
      %s102 = sphi 0, %s99
      %s103 = sphi 0, %s102
      %s119 = sphi 0, %s103
      %s123 = sphi 0, %s123
      %s125 = sphi 0, %s123
      %s126 = sphi 0, %s125
      %s140 = sphi 0, %s126
      %s144 = sphi 0, %s144
      %s146 = sphi 0, %s144
      %s147 = sphi 0, %s146
      %s161 = sphi 0, %s147
      %s165 = sphi 0, %s165
      %s167 = sphi 0, %s165
      %s168 = sphi 0, %s167
      %s182 = sphi 0, %s168
      %s186 = sphi 0, %s186
      %s188 = sphi 0, %s186
      %s189 = sphi 0, %s188
      %s203 = sphi 0, %s189
      %s211 = sphi 0, %s213
      %s214 = sphi 0, %s211
      %s215 = sphi 0, %s214
      %s231 = sphi 0, %s215
    $region4: #{tpu_custom_call.1} parent=1 // loop_header_branch
      %26 = sbr.rel (%p24) target = $region8
    $region5: #{tpu_custom_call.1} parent=1 // loop_body
      %s28 = ssub.s32 %s23, 1
      %s29 = ssub.s32 %s23, 2
      %s36 = sadd.s32 1, %s31
      %p37 = scmp.ge.s32.totalorder %s36, 1
      %s38 = scalar_select %p37, 0, %s36
      %s39 = sadd.s32 1, %s30
      %s40 = scalar_select %p37, %s39, %s30
      %p41 = scmp.ge.s32.totalorder %s40, 2
      %s42 = scalar_select %p41, 0, %s40
      %s43 = ssub.s32 %s30, %s42
      %s44 = ssub.s32 %s31, %s38
      %s45 = sor.u32 %s43, %s44
      %p46 = scmp.eq.s32.totalorder %s45, 0
      %s48 = sadd.s32 %s47, 1
      %s49 = scalar_select %p46, %s47, %s48
      %p52 = pneg %p46
      %p53 = scmp.eq.s32.totalorder %s23, 1
      %p54 = por %p52, %p53
      %p55 = scmp.ne.s32.totalorder %s47, %s50
      %p56 = scmp.eq.s32.totalorder %s23, 0
      %p57 = por %p55, %p56
      %p58 = scmp.ne.s32.totalorder %s47, %s50
      %p59 = scmp.eq.s32.totalorder %s28, 1
      %p60 = por %p58, %p59
      %p61 = scmp.ne.s32.totalorder %s50, %s51
      %p62 = scmp.eq.s32.totalorder %s28, 0
      %p63 = por %p61, %p62
      %p64 = scmp.ne.s32.totalorder %s50, %s51
      %p65 = scmp.eq.s32.totalorder %s29, 1
      %p66 = por %p64, %p65
      %p68 = scmp.ne.s32.totalorder %s51, %s67
      %p69 = scmp.eq.s32.totalorder %s29, 0
      %p70 = por %p68, %p69
      %s71 = ssub.s32 %s30, %s42
      %p72 = scmp.eq.s32.totalorder %s71, 0
      %s74 = sadd.s32 %s73, 1
      %s75 = scalar_select %p72, %s73, %s74
      %p78 = pneg %p72
      %p79 = scmp.eq.s32.totalorder %s23, 1
      %p80 = por %p78, %p79
      %p81 = scmp.ne.s32.totalorder %s73, %s76
      %p82 = scmp.eq.s32.totalorder %s23, 0
      %p83 = por %p81, %p82
      %p84 = scmp.ne.s32.totalorder %s73, %s76
      %p85 = scmp.eq.s32.totalorder %s28, 1
      %p86 = por %p84, %p85
      %p87 = scmp.ne.s32.totalorder %s76, %s77
      %p88 = scmp.eq.s32.totalorder %s28, 0
      %p89 = por %p87, %p88
      %p90 = scmp.ne.s32.totalorder %s76, %s77
      %p91 = scmp.eq.s32.totalorder %s29, 1
      %p92 = por %p90, %p91
      %p94 = scmp.ne.s32.totalorder %s77, %s93
      %p95 = scmp.eq.s32.totalorder %s29, 0
      %p96 = por %p94, %p95
      %s97 = ssub.s32 %s30, %s42
      %p98 = scmp.eq.s32.totalorder %s97, 0
      %s100 = sadd.s32 %s99, 1
      %s101 = scalar_select %p98, %s99, %s100
      %p104 = pneg %p98
      %p105 = scmp.eq.s32.totalorder %s23, 1
      %p106 = por %p104, %p105
      %p107 = scmp.ne.s32.totalorder %s99, %s102
      %p108 = scmp.eq.s32.totalorder %s23, 0
      %p109 = por %p107, %p108
      %p110 = scmp.ne.s32.totalorder %s99, %s102
      %p111 = scmp.eq.s32.totalorder %s28, 1
      %p112 = por %p110, %p111
      %p113 = scmp.ne.s32.totalorder %s102, %s103
      %p114 = scmp.eq.s32.totalorder %s28, 0
      %p115 = por %p113, %p114
      %p116 = scmp.ne.s32.totalorder %s102, %s103
      %p117 = scmp.eq.s32.totalorder %s29, 1
      %p118 = por %p116, %p117
      %p120 = scmp.ne.s32.totalorder %s103, %s119
      %p121 = scmp.eq.s32.totalorder %s29, 0
      %p122 = por %p120, %p121
      %s124 = sadd.s32 %s123, 1
      %p127 = scmp.eq.s32.totalorder %s23, 1
      %p128 = scmp.ne.s32.totalorder %s123, %s125
      %p129 = scmp.eq.s32.totalorder %s23, 0
      %p130 = por %p128, %p129
      %p131 = scmp.ne.s32.totalorder %s123, %s125
      %p132 = scmp.eq.s32.totalorder %s28, 1
      %p133 = por %p131, %p132
      %p134 = scmp.ne.s32.totalorder %s125, %s126
      %p135 = scmp.eq.s32.totalorder %s28, 0
      %p136 = por %p134, %p135
      %p137 = scmp.ne.s32.totalorder %s125, %s126
      %p138 = scmp.eq.s32.totalorder %s29, 1
      %p139 = por %p137, %p138
      %p141 = scmp.ne.s32.totalorder %s126, %s140
      %p142 = scmp.eq.s32.totalorder %s29, 0
      %p143 = por %p141, %p142
      %s145 = sadd.s32 %s144, 1
      %p148 = scmp.eq.s32.totalorder %s23, 1
      %p149 = scmp.ne.s32.totalorder %s144, %s146
      %p150 = scmp.eq.s32.totalorder %s23, 0
      %p151 = por %p149, %p150
      %p152 = scmp.ne.s32.totalorder %s144, %s146
      %p153 = scmp.eq.s32.totalorder %s28, 1
      %p154 = por %p152, %p153
      %p155 = scmp.ne.s32.totalorder %s146, %s147
      %p156 = scmp.eq.s32.totalorder %s28, 0
      %p157 = por %p155, %p156
      %p158 = scmp.ne.s32.totalorder %s146, %s147
      %p159 = scmp.eq.s32.totalorder %s29, 1
      %p160 = por %p158, %p159
      %p162 = scmp.ne.s32.totalorder %s147, %s161
      %p163 = scmp.eq.s32.totalorder %s29, 0
      %p164 = por %p162, %p163
      %s166 = sadd.s32 %s165, 1
      %p169 = scmp.eq.s32.totalorder %s23, 1
      %p170 = scmp.ne.s32.totalorder %s165, %s167
      %p171 = scmp.eq.s32.totalorder %s23, 0
      %p172 = por %p170, %p171
      %p173 = scmp.ne.s32.totalorder %s165, %s167
      %p174 = scmp.eq.s32.totalorder %s28, 1
      %p175 = por %p173, %p174
      %p176 = scmp.ne.s32.totalorder %s167, %s168
      %p177 = scmp.eq.s32.totalorder %s28, 0
      %p178 = por %p176, %p177
      %p179 = scmp.ne.s32.totalorder %s167, %s168
      %p180 = scmp.eq.s32.totalorder %s29, 1
      %p181 = por %p179, %p180
      %p183 = scmp.ne.s32.totalorder %s168, %s182
      %p184 = scmp.eq.s32.totalorder %s29, 0
      %p185 = por %p183, %p184
      %s187 = sadd.s32 %s186, 1
      %p190 = scmp.eq.s32.totalorder %s23, 1
      %p191 = scmp.ne.s32.totalorder %s186, %s188
      %p192 = scmp.eq.s32.totalorder %s23, 0
      %p193 = por %p191, %p192
      %p194 = scmp.ne.s32.totalorder %s186, %s188
      %p195 = scmp.eq.s32.totalorder %s28, 1
      %p196 = por %p194, %p195
      %p197 = scmp.ne.s32.totalorder %s188, %s189
      %p198 = scmp.eq.s32.totalorder %s28, 0
      %p199 = por %p197, %p198
      %p200 = scmp.ne.s32.totalorder %s188, %s189
      %p201 = scmp.eq.s32.totalorder %s29, 1
      %p202 = por %p200, %p201
      %p204 = scmp.ne.s32.totalorder %s189, %s203
      %p205 = scmp.eq.s32.totalorder %s29, 0
      %p206 = por %p204, %p205
      %s207 = ssub.s32 %s30, %s42
      %s208 = ssub.s32 %s31, %s38
      %s209 = sor.u32 %s207, %s208
      %p210 = scmp.eq.s32.totalorder %s209, 0
      %s212 = sadd.s32 %s211, 1
      %s213 = scalar_select %p210, %s211, %s212
      %p216 = pneg %p210
      %p217 = scmp.eq.s32.totalorder %s23, 1
      %p218 = por %p216, %p217
      %p219 = scmp.ne.s32.totalorder %s211, %s214
      %p220 = scmp.eq.s32.totalorder %s23, 0
      %p221 = por %p219, %p220
      %p222 = scmp.ne.s32.totalorder %s211, %s214
      %p223 = scmp.eq.s32.totalorder %s28, 1
      %p224 = por %p222, %p223
      %p225 = scmp.ne.s32.totalorder %s214, %s215
      %p226 = scmp.eq.s32.totalorder %s28, 0
      %p227 = por %p225, %p226
      %p228 = scmp.ne.s32.totalorder %s214, %s215
      %p229 = scmp.eq.s32.totalorder %s29, 1
      %p230 = por %p228, %p229
      %p232 = scmp.ne.s32.totalorder %s215, %s231
      %p233 = scmp.eq.s32.totalorder %s29, 0
      %p234 = por %p232, %p233
      %p235 = scmp.le.s32.totalorder 1, %s23
      %p236 = scmp.lt.s32.totalorder %s23, 3
      %p237 = pnand %p235, %p236
      %p238 = pneg %p237
      // Predicated region
      $region9: #{tpu_custom_call.1} parent=5 // pred_check
        _
      $region10: #{tpu_custom_call.1} parent=5 // pred_check_branch
        %240 = sbr.rel (%p237) target = $region12
      $region11: #{tpu_custom_call.1} parent=5 // pred_region
        %s241 = ssub.s32 %s23, 1
        // Predicated region
        $region13: #{tpu_custom_call.1} parent=11 // pred_check
          %p242 = pneg %p136
        $region14: #{tpu_custom_call.1} parent=11 // pred_check_branch
          %244 = sbr.rel (%p242) target = $region16
        $region15: #{tpu_custom_call.1} parent=11 // pred_region
          %s246 = ssub.s32 2048, 2048
          %247 = vsyncadd [#allocation6], %s246
          %s248 = sshll.u32 [#allocation7], 4
          %s249 = int_to_ptr.vmem [resolvable:$true] %s248
          %254 = dma.hbm_to_vmem [thread:$0]  %s3, 2048, %s249, [#allocation6], 128, 128, 8
        $region16: #{tpu_custom_call.1} parent=11 // pred_fallthru
          _
        // Predicated region
        $region17: #{tpu_custom_call.1} parent=11 // pred_check
          %p255 = pneg %p157
        $region18: #{tpu_custom_call.1} parent=11 // pred_check_branch
          %257 = sbr.rel (%p255) target = $region20
        $region19: #{tpu_custom_call.1} parent=11 // pred_region
          _
        $region20: #{tpu_custom_call.1} parent=11 // pred_fallthru
          _
        // Predicated region
        $region21: #{tpu_custom_call.1} parent=11 // pred_check
          %p258 = pneg %p178
        $region22: #{tpu_custom_call.1} parent=11 // pred_check_branch
          %260 = sbr.rel (%p258) target = $region24
        $region23: #{tpu_custom_call.1} parent=11 // pred_region
          %s262 = ssub.s32 1024, 1024
          %263 = vsyncadd [#allocation9], %s262
          %s264 = sshll.u32 [#allocation8], 4
          %s265 = int_to_ptr.vmem [resolvable:$true] %s264
          %270 = dma.hbm_to_vmem [thread:$0]  %s5, 1024, %s265, [#allocation9], 64, 64, 4
        $region24: #{tpu_custom_call.1} parent=11 // pred_fallthru
          _
        // Predicated region
        $region25: #{tpu_custom_call.1} parent=11 // pred_check
          %p271 = pneg %p199
        $region26: #{tpu_custom_call.1} parent=11 // pred_check_branch
          %273 = sbr.rel (%p271) target = $region28
        $region27: #{tpu_custom_call.1} parent=11 // pred_region
          _
        $region28: #{tpu_custom_call.1} parent=11 // pred_fallthru
          _
      $region12: #{tpu_custom_call.1} parent=5 // pred_fallthru
        _
      %p274 = scmp.lt.s32.totalorder %s23, 2
      // Predicated region
      $region29: #{tpu_custom_call.1} parent=5 // pred_check
        %p275 = pneg %p274
      $region30: #{tpu_custom_call.1} parent=5 // pred_check_branch
        %277 = sbr.rel (%p275) target = $region32
      $region31: #{tpu_custom_call.1} parent=5 // pred_region
        // Predicated region
        $region33: #{tpu_custom_call.1} parent=31 // pred_check
          %p278 = pneg %p57
        $region34: #{tpu_custom_call.1} parent=31 // pred_check_branch
          %280 = sbr.rel (%p278) target = $region36
        $region35: #{tpu_custom_call.1} parent=31 // pred_region
          %s281 = sand.u32 %s47, 1
          %s282 = scalar_lea.sflag [#allocation3], %s281
          %s283 = sand.u32 %s47, 1
          %s284 = smul.addr %s283, 4
          %s285 = scalar_lea.vmem [#allocation2], %s284
          %s287 = ssub.s32 64, 64
          %288 = vsyncadd %s282, %s287
          %s289 = sadd.s32 %s31, %s30
          %s290 = smul.addr %s289, 64
          %s291 = scalar_lea.hbm %s0, %s290
          %s293 = sshll.u32 %s285, 4
          %s294 = int_to_ptr.vmem [resolvable:$true] %s293
          %296 = dma.hbm_to_vmem [thread:$0]  %s291, 64, %s294, %s282
        $region36: #{tpu_custom_call.1} parent=31 // pred_fallthru
          _
        // Predicated region
        $region37: #{tpu_custom_call.1} parent=31 // pred_check
          %p297 = pneg %p83
        $region38: #{tpu_custom_call.1} parent=31 // pred_check_branch
          %299 = sbr.rel (%p297) target = $region40
        $region39: #{tpu_custom_call.1} parent=31 // pred_region
          %p300 = scmp.lt.s32.totalorder %s30, 1
          %s301 = scalar_select %p300, %s30, 1
          %s302 = scalar_lea.vmem %s1, %s301
        $region40: #{tpu_custom_call.1} parent=31 // pred_fallthru
          _
        // Predicated region
        $region41: #{tpu_custom_call.1} parent=31 // pred_check
          %p303 = pneg %p109
        $region42: #{tpu_custom_call.1} parent=31 // pred_check_branch
          %305 = sbr.rel (%p303) target = $region44
        $region43: #{tpu_custom_call.1} parent=31 // pred_region
          %s306 = sand.u32 %s23, 1
          %s307 = scalar_lea.sflag [#allocation6], %s306
          %s308 = sand.u32 %s99, 1
          %s309 = smul.addr %s308, 64
          %s310 = scalar_lea.vmem [#allocation5], %s309
          %s312 = ssub.s32 1024, 1024
          %313 = vsyncadd %s307, %s312
          %s314 = smul.addr %s30, 16
          %s315 = smul.addr %s314, 64
          %s316 = scalar_lea.hbm %s2, %s315
          %s317 = sshll.u32 %s310, 4
          %s318 = int_to_ptr.vmem [resolvable:$true] %s317
          %323 = dma.hbm_to_vmem [thread:$0]  %s316, 1024, %s318, %s307, 64, 64, 4
        $region44: #{tpu_custom_call.1} parent=31 // pred_fallthru
          _
      $region32: #{tpu_custom_call.1} parent=5 // pred_fallthru
        _
      %p324 = scmp.le.s32.totalorder 1, %s23
      %p325 = scmp.lt.s32.totalorder %s23, 3
      %p326 = pnand %p324, %p325
      %p327 = pneg %p326
      // Predicated region
      $region45: #{tpu_custom_call.1} parent=5 // pred_check
        _
      $region46: #{tpu_custom_call.1} parent=5 // pred_check_branch
        %329 = sbr.rel (%p326) target = $region48
      $region47: #{tpu_custom_call.1} parent=5 // pred_region
        %s330 = ssub.s32 %s23, 1
        %s331 = sand.u32 %s50, 1
        %s332 = scalar_lea.sflag [#allocation3], %s331
        %s333 = sand.u32 %s50, 1
        %s334 = smul.addr %s333, 4
        %s335 = scalar_lea.vmem [#allocation2], %s334
        // Predicated region
        $region49: #{tpu_custom_call.1} parent=47 // pred_check
          %p336 = pneg %p63
        $region50: #{tpu_custom_call.1} parent=47 // pred_check_branch
          %338 = sbr.rel (%p336) target = $region52
        $region51: #{tpu_custom_call.1} parent=47 // pred_region
          %339 = dma.done %s332, 64
        $region52: #{tpu_custom_call.1} parent=47 // pred_fallthru
          _
        %s340 = sand.u32 %s28, 1
        %s341 = scalar_lea.sflag [#allocation6], %s340
        %s342 = sand.u32 %s102, 1
        %s343 = smul.addr %s342, 64
        %s344 = scalar_lea.vmem [#allocation5], %s343
        // Predicated region
        $region53: #{tpu_custom_call.1} parent=47 // pred_check
          %p345 = pneg %p115
        $region54: #{tpu_custom_call.1} parent=47 // pred_check_branch
          %347 = sbr.rel (%p345) target = $region56
        $region55: #{tpu_custom_call.1} parent=47 // pred_region
          %348 = dma.done %s341, 1024
        $region56: #{tpu_custom_call.1} parent=47 // pred_fallthru
          _
        // Predicated region
        $region57: #{tpu_custom_call.1} parent=47 // pred_check
          %p349 = pneg %p136
        $region58: #{tpu_custom_call.1} parent=47 // pred_check_branch
          %351 = sbr.rel (%p349) target = $region60
        $region59: #{tpu_custom_call.1} parent=47 // pred_region
          %352 = dma.done [#allocation6], 2048
        $region60: #{tpu_custom_call.1} parent=47 // pred_fallthru
          _
        // Predicated region
        $region61: #{tpu_custom_call.1} parent=47 // pred_check
          %p353 = pneg %p178
        $region62: #{tpu_custom_call.1} parent=47 // pred_check_branch
          %355 = sbr.rel (%p353) target = $region64
        $region63: #{tpu_custom_call.1} parent=47 // pred_region
          %356 = dma.done [#allocation9], 1024
        $region64: #{tpu_custom_call.1} parent=47 // pred_fallthru
          _
        %s357 = sand.u32 %s50, 1
        %s358 = scalar_lea.sflag [#allocation3], %s357
        %s359 = sand.u32 %s50, 1
        %s360 = smul.addr %s359, 4
        %s361 = scalar_lea.vmem [#allocation2], %s360
        %p362 = pneg %p63
        %p363 = pneg %p60
        %p364 = scmp.lt.s32.totalorder %s32, 1
        %s365 = scalar_select %p364, %s32, 1
        %s366 = scalar_lea.vmem %s1, %s365
        %p367 = pneg %p89
        %p368 = pneg %p86
        %s369 = sand.u32 %s28, 1
        %s370 = scalar_lea.sflag [#allocation6], %s369
        %s371 = sand.u32 %s102, 1
        %s372 = smul.addr %s371, 64
        %s373 = scalar_lea.vmem [#allocation5], %s372
        %p374 = pneg %p115
        %p375 = pneg %p112
        %p376 = pneg %p136
        %p377 = pneg %p133
        %p378 = pneg %p157
        %p379 = pneg %p154
        %p380 = pneg %p178
        %p381 = pneg %p175
        %p382 = pneg %p199
        %p383 = pneg %p196
        %p384 = pneg %p227
        %p385 = pneg %p224
        %s386 = sand.u32 %s214, 1
        %s387 = scalar_lea.sflag [#allocation4], %s386
        %s388 = sand.u32 %s214, 1
        %s389 = smul.addr %s388, 8
        %s390 = scalar_lea.vmem [#allocation10], %s389
        %p391 = scmp.lt.s32.totalorder %s32, 1
        %s392 = scalar_select %p391, %s32, 1
        %s393 = scalar_lea.vmem %s1, %s392
        %v395 = vld [vmem:[%s335] sm:$0xf]
        %v396 = vld [vmem:[#allocation7] sm:$0xff]
        %v397 = vld [vmem:[#allocation7 + $0x8] sm:$0xff]
        %v398 = vld [vmem:[#allocation7 + $0x10] sm:$0xff]
        %v399 = vld [vmem:[#allocation7 + $0x18] sm:$0xff]
        %v400 = vld [vmem:[#allocation7 + $0x20] sm:$0xff]
        %v401 = vld [vmem:[#allocation7 + $0x28] sm:$0xff]
        %v402 = vld [vmem:[#allocation7 + $0x30] sm:$0xff]
        %v403 = vld [vmem:[#allocation7 + $0x38] sm:$0xff]
        %v404 = vld [vmem:[#allocation7 + $0x40] sm:$0xff]
        %v405 = vld [vmem:[#allocation7 + $0x48] sm:$0xff]
        %v406 = vld [vmem:[#allocation7 + $0x50] sm:$0xff]
        %v407 = vld [vmem:[#allocation7 + $0x58] sm:$0xff]
        %v408 = vld [vmem:[#allocation7 + $0x60] sm:$0xff]
        %v409 = vld [vmem:[#allocation7 + $0x68] sm:$0xff]
        %v410 = vld [vmem:[#allocation7 + $0x70] sm:$0xff]
        %v411 = vld [vmem:[#allocation7 + $0x78] sm:$0xff]
        %v428 = vunpack.c.l.b16 %v396
        %v429 = vunpack.c.h.b16 %v396
        %v430 = vunpack.c.l.b16 %v397
        %v431 = vunpack.c.h.b16 %v397
        %v432 = vunpack.c.l.b16 %v398
        %v433 = vunpack.c.h.b16 %v398
        %v434 = vunpack.c.l.b16 %v399
        %v435 = vunpack.c.h.b16 %v399
        %v436 = vunpack.c.l.b16 %v400
        %v437 = vunpack.c.h.b16 %v400
        %v438 = vunpack.c.l.b16 %v401
        %v439 = vunpack.c.h.b16 %v401
        %v440 = vunpack.c.l.b16 %v402
        %v441 = vunpack.c.h.b16 %v402
        %v442 = vunpack.c.l.b16 %v403
        %v443 = vunpack.c.h.b16 %v403
        %v444 = vunpack.c.l.b16 %v404
        %v445 = vunpack.c.h.b16 %v404
        %v446 = vunpack.c.l.b16 %v405
        %v447 = vunpack.c.h.b16 %v405
        %v448 = vunpack.c.l.b16 %v406
        %v449 = vunpack.c.h.b16 %v406
        %v450 = vunpack.c.l.b16 %v407
        %v451 = vunpack.c.h.b16 %v407
        %v452 = vunpack.c.l.b16 %v408
        %v453 = vunpack.c.h.b16 %v408
        %v454 = vunpack.c.l.b16 %v409
        %v455 = vunpack.c.h.b16 %v409
        %v456 = vunpack.c.l.b16 %v410
        %v457 = vunpack.c.h.b16 %v410
        %v458 = vunpack.c.l.b16 %v411
        %v459 = vunpack.c.h.b16 %v411
        %v460 = vpack.c.b16 %v430, %v428
        %v461 = vpack.c.b16 %v431, %v429
        %v462 = vpack.c.b16 %v434, %v432
        %v463 = vpack.c.b16 %v435, %v433
        %v464 = vpack.c.b16 %v438, %v436
        %v465 = vpack.c.b16 %v439, %v437
        %v466 = vpack.c.b16 %v442, %v440
        %v467 = vpack.c.b16 %v443, %v441
        %v468 = vpack.c.b16 %v446, %v444
        %v469 = vpack.c.b16 %v447, %v445
        %v470 = vpack.c.b16 %v450, %v448
        %v471 = vpack.c.b16 %v451, %v449
        %v472 = vpack.c.b16 %v454, %v452
        %v473 = vpack.c.b16 %v455, %v453
        %v474 = vpack.c.b16 %v458, %v456
        %v475 = vpack.c.b16 %v459, %v457
        %492 = vmatprep.subr.bf16.mxu0 %v461
        %493 = vmatpush1.bf16.msra.mxu0 %v460
        %494 = vmatprep.subr.bf16.mxu0 %v463
        %495 = vmatpush1.bf16.msra.mxu0 %v462
        %496 = vmatprep.subr.bf16.mxu0 %v465
        %497 = vmatpush1.bf16.msra.mxu0 %v464
        %498 = vmatprep.subr.bf16.mxu0 %v467
        %499 = vmatpush1.bf16.msra.mxu0 %v466
        %500 = vmatprep.subr.bf16.mxu0 %v469
        %501 = vmatpush1.bf16.msra.mxu0 %v468
        %502 = vmatprep.subr.bf16.mxu0 %v471
        %503 = vmatpush1.bf16.msra.mxu0 %v470
        %504 = vmatprep.subr.bf16.mxu0 %v473
        %505 = vmatpush1.bf16.msra.mxu0 %v472
        %506 = vmatprep.subr.bf16.mxu0 %v475
        %507 = vmatpush1.bf16.msra.mxu0 %v474
        %508 = vmatprep.subr.bf16.mxu0 0
        %509 = vmatpush1.bf16.msra.mxu0 0
        %510 = vmatprep.subr.bf16.mxu0 0
        %511 = vmatpush1.bf16.msra.mxu0 0
        %512 = vmatprep.subr.bf16.mxu0 0
        %513 = vmatpush1.bf16.msra.mxu0 0
        %514 = vmatprep.subr.bf16.mxu0 0
        %515 = vmatpush1.bf16.msra.mxu0 0
        %516 = vmatprep.subr.bf16.mxu0 0
        %517 = vmatpush1.bf16.msra.mxu0 0
        %518 = vmatprep.subr.bf16.mxu0 0
        %519 = vmatpush1.bf16.msra.mxu0 0
        %520 = vmatprep.subr.bf16.mxu0 0
        %521 = vmatpush1.bf16.msra.mxu0 0
        %522 = vmatprep.subr.bf16.mxu0 0
        %523 = vmatpush1.bf16.msra.mxu0 0
        %524 = vmatprep.mubr.bf16.mxu0 0
        %525 = vmatmul.mubr.bf16.gmra.mrb[0].mxu0 %v395
        %v526 = vpop.f32.mrb[0].mxu0
        %v527 = vadd.f32 0.0, %v526
        %v528 = vpop.f32.mrb[0].mxu0
        %v529 = vadd.f32 0.0, %v528
        %v530 = vpop.f32.mrb[0].mxu0
        %v531 = vpop.f32.mrb[0].mxu0
        %532 = vdwg.mxu0
        %v533 = vld [vmem:[%s393] sm:$0x1]
        %v535 = vlaneseq
        %v536 = vshrl.u32 %v535, 7
        %v537 = vsub.s32 0, %v536
        %v538 = vrot.slane %v533, %v537
        %v540 = vadd.f32 %v527, %v538
        %v541 = vxor.u32 %v540, 2147483648
        %v542 = vmul.f32 %v541, 1.442695
        %v543 = vpow.pop %v542
        %v544 = vadd.f32 %v543, 1.0
        %v545 = vrcp.pop %v544
        %v546 = vmul.f32 1.0, %v545
        %v547 = vpack.c.bf16 %v546, %v546
        %v548 = vld [vmem:[%s344] sm:$0xf]
        %v549 = vld [vmem:[%s344 + $0x4] sm:$0xf]
        %v550 = vld [vmem:[%s344 + $0x8] sm:$0xf]
        %v551 = vld [vmem:[%s344 + $0xc] sm:$0xf]
        %v552 = vld [vmem:[%s344 + $0x10] sm:$0xf]
        %v553 = vld [vmem:[%s344 + $0x14] sm:$0xf]
        %v554 = vld [vmem:[%s344 + $0x18] sm:$0xf]
        %v555 = vld [vmem:[%s344 + $0x1c] sm:$0xf]
        %v556 = vld [vmem:[%s344 + $0x20] sm:$0xf]
        %v557 = vld [vmem:[%s344 + $0x24] sm:$0xf]
        %v558 = vld [vmem:[%s344 + $0x28] sm:$0xf]
        %v559 = vld [vmem:[%s344 + $0x2c] sm:$0xf]
        %v560 = vld [vmem:[%s344 + $0x30] sm:$0xf]
        %v561 = vld [vmem:[%s344 + $0x34] sm:$0xf]
        %v562 = vld [vmem:[%s344 + $0x38] sm:$0xf]
        %v563 = vld [vmem:[%s344 + $0x3c] sm:$0xf]
        %v580 = vunpack.c.l.b16 %v548
        %v581 = vunpack.c.l.b16 %v549
        %v582 = vunpack.c.l.b16 %v550
        %v583 = vunpack.c.l.b16 %v551
        %v584 = vunpack.c.l.b16 %v552
        %v585 = vunpack.c.l.b16 %v553
        %v586 = vunpack.c.l.b16 %v554
        %v587 = vunpack.c.l.b16 %v555
        %v588 = vunpack.c.l.b16 %v556
        %v589 = vunpack.c.l.b16 %v557
        %v590 = vunpack.c.l.b16 %v558
        %v591 = vunpack.c.l.b16 %v559
        %v592 = vunpack.c.l.b16 %v560
        %v593 = vunpack.c.l.b16 %v561
        %v594 = vunpack.c.l.b16 %v562
        %v595 = vunpack.c.l.b16 %v563
        %v596 = vpack.c.b16 %v581, %v580
        %v597 = vpack.c.b16 %v583, %v582
        %v598 = vpack.c.b16 %v585, %v584
        %v599 = vpack.c.b16 %v587, %v586
        %v600 = vpack.c.b16 %v589, %v588
        %v601 = vpack.c.b16 %v591, %v590
        %v602 = vpack.c.b16 %v593, %v592
        %v603 = vpack.c.b16 %v595, %v594
        %612 = vmatprep.subr.bf16.mxu0 0
        %613 = vmatpush1.bf16.msra.mxu0 %v596
        %614 = vmatprep.subr.bf16.mxu0 0
        %615 = vmatpush1.bf16.msra.mxu0 %v597
        %616 = vmatprep.subr.bf16.mxu0 0
        %617 = vmatpush1.bf16.msra.mxu0 %v598
        %618 = vmatprep.subr.bf16.mxu0 0
        %619 = vmatpush1.bf16.msra.mxu0 %v599
        %620 = vmatprep.subr.bf16.mxu0 0
        %621 = vmatpush1.bf16.msra.mxu0 %v600
        %622 = vmatprep.subr.bf16.mxu0 0
        %623 = vmatpush1.bf16.msra.mxu0 %v601
        %624 = vmatprep.subr.bf16.mxu0 0
        %625 = vmatpush1.bf16.msra.mxu0 %v602
        %626 = vmatprep.subr.bf16.mxu0 0
        %627 = vmatpush1.bf16.msra.mxu0 %v603
        %628 = vmatprep.subr.bf16.mxu0 0
        %629 = vmatpush1.bf16.msra.mxu0 0
        %630 = vmatprep.subr.bf16.mxu0 0
        %631 = vmatpush1.bf16.msra.mxu0 0
        %632 = vmatprep.subr.bf16.mxu0 0
        %633 = vmatpush1.bf16.msra.mxu0 0
        %634 = vmatprep.subr.bf16.mxu0 0
        %635 = vmatpush1.bf16.msra.mxu0 0
        %636 = vmatprep.subr.bf16.mxu0 0
        %637 = vmatpush1.bf16.msra.mxu0 0
        %638 = vmatprep.subr.bf16.mxu0 0
        %639 = vmatpush1.bf16.msra.mxu0 0
        %640 = vmatprep.subr.bf16.mxu0 0
        %641 = vmatpush1.bf16.msra.mxu0 0
        %642 = vmatprep.subr.bf16.mxu0 0
        %643 = vmatpush1.bf16.msra.mxu0 0
        %644 = vmatprep.mubr.bf16.mxu0 0
        %645 = vmatmul.mubr.bf16.gmra.mrb[0].mxu0 %v547
        %v646 = vpop.f32.mrb[0].mxu0
        %v647 = vadd.f32 0.0, %v646
        %v648 = vpop.f32.mrb[0].mxu0
        %v649 = vpop.f32.mrb[0].mxu0
        %v650 = vpop.f32.mrb[0].mxu0
        %651 = vdwg.mxu0
        %v652 = vadd.f32 %v529, %v647
        %v653 = vld [vmem:[%s4] sm:$0x1]
        %v655 = vlaneseq
        %v656 = vshrl.u32 %v655, 7
        %v657 = vsub.s32 0, %v656
        %v658 = vrot.slane %v653, %v657
        %v660 = vadd.f32 %v652, %v658
        %v661 = vmax.f32 %v660, 0.0
        %v662 = vpack.c.bf16 %v661, %v661
        %v663 = vld [vmem:[#allocation8] sm:$0xf]
        %v664 = vld [vmem:[#allocation8 + $0x4] sm:$0xf]
        %v665 = vld [vmem:[#allocation8 + $0x8] sm:$0xf]
        %v666 = vld [vmem:[#allocation8 + $0xc] sm:$0xf]
        %v667 = vld [vmem:[#allocation8 + $0x10] sm:$0xf]
        %v668 = vld [vmem:[#allocation8 + $0x14] sm:$0xf]
        %v669 = vld [vmem:[#allocation8 + $0x18] sm:$0xf]
        %v670 = vld [vmem:[#allocation8 + $0x1c] sm:$0xf]
        %v671 = vld [vmem:[#allocation8 + $0x20] sm:$0xf]
        %v672 = vld [vmem:[#allocation8 + $0x24] sm:$0xf]
        %v673 = vld [vmem:[#allocation8 + $0x28] sm:$0xf]
        %v674 = vld [vmem:[#allocation8 + $0x2c] sm:$0xf]
        %v675 = vld [vmem:[#allocation8 + $0x30] sm:$0xf]
        %v676 = vld [vmem:[#allocation8 + $0x34] sm:$0xf]
        %v677 = vld [vmem:[#allocation8 + $0x38] sm:$0xf]
        %v678 = vld [vmem:[#allocation8 + $0x3c] sm:$0xf]
        %v679 = vld [vmem:[%s6] sm:$0x1]
        %v681 = vlaneseq
        %v682 = vshrl.u32 %v681, 7
        %v683 = vsub.s32 0, %v682
        %v684 = vrot.slane %v679, %v683
        %v702 = vunpack.c.l.b16 %v663
        %v703 = vunpack.c.l.b16 %v664
        %v704 = vunpack.c.l.b16 %v665
        %v705 = vunpack.c.l.b16 %v666
        %v706 = vunpack.c.l.b16 %v667
        %v707 = vunpack.c.l.b16 %v668
        %v708 = vunpack.c.l.b16 %v669
        %v709 = vunpack.c.l.b16 %v670
        %v710 = vunpack.c.l.b16 %v671
        %v711 = vunpack.c.l.b16 %v672
        %v712 = vunpack.c.l.b16 %v673
        %v713 = vunpack.c.l.b16 %v674
        %v714 = vunpack.c.l.b16 %v675
        %v715 = vunpack.c.l.b16 %v676
        %v716 = vunpack.c.l.b16 %v677
        %v717 = vunpack.c.l.b16 %v678
        %v718 = vpack.c.b16 %v703, %v702
        %v719 = vpack.c.b16 %v705, %v704
        %v720 = vpack.c.b16 %v707, %v706
        %v721 = vpack.c.b16 %v709, %v708
        %v722 = vpack.c.b16 %v711, %v710
        %v723 = vpack.c.b16 %v713, %v712
        %v724 = vpack.c.b16 %v715, %v714
        %v725 = vpack.c.b16 %v717, %v716
        %734 = vmatprep.subr.bf16.mxu0 0
        %735 = vmatpush1.bf16.msra.mxu0 %v718
        %736 = vmatprep.subr.bf16.mxu0 0
        %737 = vmatpush1.bf16.msra.mxu0 %v719
        %738 = vmatprep.subr.bf16.mxu0 0
        %739 = vmatpush1.bf16.msra.mxu0 %v720
        %740 = vmatprep.subr.bf16.mxu0 0
        %741 = vmatpush1.bf16.msra.mxu0 %v721
        %742 = vmatprep.subr.bf16.mxu0 0
        %743 = vmatpush1.bf16.msra.mxu0 %v722
        %744 = vmatprep.subr.bf16.mxu0 0
        %745 = vmatpush1.bf16.msra.mxu0 %v723
        %746 = vmatprep.subr.bf16.mxu0 0
        %747 = vmatpush1.bf16.msra.mxu0 %v724
        %748 = vmatprep.subr.bf16.mxu0 0
        %749 = vmatpush1.bf16.msra.mxu0 %v725
        %750 = vmatprep.subr.bf16.mxu0 0
        %751 = vmatpush1.bf16.msra.mxu0 0
        %752 = vmatprep.subr.bf16.mxu0 0
        %753 = vmatpush1.bf16.msra.mxu0 0
        %754 = vmatprep.subr.bf16.mxu0 0
        %755 = vmatpush1.bf16.msra.mxu0 0
        %756 = vmatprep.subr.bf16.mxu0 0
        %757 = vmatpush1.bf16.msra.mxu0 0
        %758 = vmatprep.subr.bf16.mxu0 0
        %759 = vmatpush1.bf16.msra.mxu0 0
        %760 = vmatprep.subr.bf16.mxu0 0
        %761 = vmatpush1.bf16.msra.mxu0 0
        %762 = vmatprep.subr.bf16.mxu0 0
        %763 = vmatpush1.bf16.msra.mxu0 0
        %764 = vmatprep.subr.bf16.mxu0 0
        %765 = vmatpush1.bf16.msra.mxu0 0
        %766 = vmatprep.mubr.bf16.mxu0 0
        %767 = vmatmul.mubr.bf16.gmra.mrb[0].mxu0 %v662
        %v768 = vpop.f32.mrb[0].mxu0
        %v769 = vadd.f32 %v684, %v768
        %v770 = vpop.f32.mrb[0].mxu0
        %v771 = vpop.f32.mrb[0].mxu0
        %v772 = vpop.f32.mrb[0].mxu0
        %773 = vdwg.mxu0
        %774 = vst [vmem:[%s390] sm:$0xff] %v769
        %s775 = sand.u32 %s214, 1
        %s776 = scalar_lea.sflag [#allocation4], %s775
        %s777 = sand.u32 %s214, 1
        %s778 = smul.addr %s777, 8
        %s779 = scalar_lea.vmem [#allocation10], %s778
        // Predicated region
        $region65: #{tpu_custom_call.1} parent=47 // pred_check
          %p780 = pneg %p224
        $region66: #{tpu_custom_call.1} parent=47 // pred_check_branch
          %782 = sbr.rel (%p780) target = $region68
        $region67: #{tpu_custom_call.1} parent=47 // pred_region
          %s784 = ssub.s32 128, 128
          %785 = vsyncadd %s776, %s784
          %s786 = sadd.s32 %s33, %s32
          %s787 = smul.addr %s786, 128
          %s788 = scalar_lea.hbm %s7, %s787
          %s790 = sshll.u32 %s779, 4
          %s791 = int_to_ptr.vmem [resolvable:$true] %s790
          %793 = dma.vmem_to_hbm [thread:$0]  %s791, 128, %s788, %s776
        $region68: #{tpu_custom_call.1} parent=47 // pred_fallthru
          _
      $region48: #{tpu_custom_call.1} parent=5 // pred_fallthru
        _
      %p794 = scmp.le.s32.totalorder 2, %s23
      // Predicated region
      $region69: #{tpu_custom_call.1} parent=5 // pred_check
        %p795 = pneg %p794
      $region70: #{tpu_custom_call.1} parent=5 // pred_check_branch
        %797 = sbr.rel (%p795) target = $region72
      $region71: #{tpu_custom_call.1} parent=5 // pred_region
        %s798 = ssub.s32 %s23, 2
        // Predicated region
        $region73: #{tpu_custom_call.1} parent=71 // pred_check
          %p799 = pneg %p230
        $region74: #{tpu_custom_call.1} parent=71 // pred_check_branch
          %801 = sbr.rel (%p799) target = $region76
        $region75: #{tpu_custom_call.1} parent=71 // pred_region
          %s802 = sand.u32 %s215, 1
          %s803 = scalar_lea.sflag [#allocation4], %s802
          %s804 = sand.u32 %s215, 1
          %s805 = smul.addr %s804, 8
          %s806 = scalar_lea.vmem [#allocation10], %s805
          %807 = dma.done %s803, 128
        $region76: #{tpu_custom_call.1} parent=71 // pred_fallthru
          _
      $region72: #{tpu_custom_call.1} parent=5 // pred_fallthru
        _
    $region6: #{tpu_custom_call.1} parent=1 // loop_footer
      %s27 = sadd.s32 1, %s23
    $region7: #{tpu_custom_call.1} parent=1 // loop_footer_branch
      %22 = sbr.rel target = $region3
    $region8: #{tpu_custom_call.1} parent=1 // loop_exit
      _
    %808 = vsyncpa [#allocation3], 1
    %s809 = scalar_lea.sflag [#allocation3], 1
    %810 = vsyncpa %s809, 1
    %811 = vsyncpa [#allocation6], 1
    %s812 = scalar_lea.sflag [#allocation6], 1
    %813 = vsyncpa %s812, 1
    %814 = vsyncpa [#allocation9], 1
    %815 = vsyncpa [#allocation4], 1
    %s816 = scalar_lea.sflag [#allocation4], 1
    %817 = vsyncpa %s816, 1

</llo_original>
